<compile_context>
chip_gen: v5e
topology: v5e:2x2
jax: 0.10.0
libtpu: 0.0.40
codegen_flags: <defaults>
</compile_context>

<pallas_src>
import math

import numpy as np
import jax
import jax.numpy as jnp
from jax import lax
from jax.experimental import pallas as pl
from jax.experimental.pallas import tpu as pltpu  # noqa: F401  (TPU backend)

# ---------------- config ----------------
B, S, D = 2, 8, 32      # batch, sequence, emb_dim
H = 4                   # num_heads
DH = D // H             # per-head dim
FF = 64                 # ff_dim
LN_EPS = 1e-5

R = B * S               # flattened rows (batch*seq) = 16
C = H * R               # score columns, head-major key axis = 64
NEG = -1e30             # additive mask value for cross-batch keys

# aux-slab row layout (all vectors at lane offset 0, masks at sublane multiples of 8)
_ROW_BQKV = 0           # (1, 4D)  fused qkv+ones bias
_ROW_LN1G = 1           # (1, D)
_ROW_LN1B = 2           # (1, D)
_ROW_BO = 3             # (1, D)
_ROW_B1 = 4             # (1, FF)  ln2-folded MLP bias 1
_ROW_B2 = 5             # (1, D)
_ROW_HSEL = 8           # (C, 3D)  head-selector mask, tiled x3 for [k|v|ones]
_ROW_BMASK = _ROW_HSEL + C   # (R, C) additive cross-batch score mask
AUX_ROWS = _ROW_BMASK + R    # 88


def tf_block_kernel(x_ref, w_ref, aux_ref, o_ref):
    """Whole batch in one invocation; x_ref is (B*S, D); two packed param slabs in VMEM."""
    x = x_ref[...]                                               # (R, D)

    # ----- LayerNorm 1 (two independent lane reductions; affine NOT folded: xn feeds
    #       the attention residual and must be materialized) -----
    mu = jnp.mean(x, axis=-1, keepdims=True)
    ms = jnp.mean(x * x, axis=-1, keepdims=True)
    xn = (x - mu) * lax.rsqrt(ms - mu * mu + LN_EPS) \
        * aux_ref[_ROW_LN1G:_ROW_LN1G + 1, 0:D] + aux_ref[_ROW_LN1B:_ROW_LN1B + 1, 0:D]

    # ----- fused [Q | K | V | ones] projection -----
    # Weight columns 3D:4D are zero and the bias there is 1.0, so lanes 96:128 of qkv are
    # exactly 1.0.  The 1/sqrt(DH) score scale is folded into the Q weights/bias.
    qkv = jnp.dot(xn, w_ref[0:D, :],
                  preferred_element_type=jnp.float32) + aux_ref[_ROW_BQKV:_ROW_BQKV + 1, :]
    q = qkv[:, 0:D]                                              # (R, D), pre-scaled
    kv1 = qkv[:, D:4 * D]                                        # (R, 3D) = [k | v | 1]

    # ----- multi-head attention, all heads & batch elements at once -----
    # Head-major key axis: column c = h*R + j  <->  (head h, flattened key row j).
    # One sublane 4x replication + one precomputed-mask multiply builds both MXU operands:
    #   kv1_rep[:, 0:D]   = k_rep  (head-masked keys)
    #   kv1_rep[:, D:3D]  = [v_rep | head_sel]  (ones * head_sel == head_sel)
    kv1_rep = jnp.concatenate([kv1] * H, axis=0) \
        * aux_ref[_ROW_HSEL:_ROW_HSEL + C, 0:3 * D]              # (C, 3D)
    k_rep = kv1_rep[:, 0:D]                                      # (C, D)
    vh = kv1_rep[:, D:3 * D]                                     # (C, 2D)

    # scores[i, h*R + j] = sum_{d in head h} q_scaled[i, d] * k[j, d]
    # RHS contracts on dim 1; a restructure to avoid a possible (64,32) vxpose costs an
    # extra MXU round trip or equivalent XLU lane-tiling, so this form is kept knowingly.
    s = lax.dot_general(q, k_rep, (((1,), (1,)), ((), ())),
                        preferred_element_type=jnp.float32)      # (R, C)
    # Precomputed additive {0, NEG} mask for keys of other batch elements.
    s = s + aux_ref[_ROW_BMASK:_ROW_BMASK + R, 0:C]

    # Softmax per (row, head-chunk).  Subtracting the global row max is shift-invariant
    # for every chunk, so no chunked (sub-lane) max reduction is needed.
    m = jnp.max(s, axis=-1, keepdims=True)
    e = jnp.exp(s - m)                                           # (R, C)

    # One fused matmul gives both the context numerator and the softmax denominators:
    #   cd[:, 0:D]  = sum_j e_{head(d)}[i, j] * v[j, d]
    #   cd[:, D:2D] = sum_j e_{head(d)}[i, j]
    cd = jnp.dot(e, vh, preferred_element_type=jnp.float32)      # (R, 2D)
    # exact reciprocal: tiny, off the critical path, keeps the 2e-4 check margin
    ctx = cd[:, 0:D] * pl.reciprocal(cd[:, D:2 * D], approx=False)

    attn_out = jnp.dot(ctx, w_ref[D:2 * D, 0:D],
                       preferred_element_type=jnp.float32) + aux_ref[_ROW_BO:_ROW_BO + 1, 0:D]

    # ----- residual 1 (PyTorch: x = ln1(x); x = x + atten_out) -----
    x1 = xn + attn_out

    # ----- LayerNorm 2 (affine folded into w1/b1 at prepare time) + MLP -----
    mu2 = jnp.mean(x1, axis=-1, keepdims=True)
    ms2 = jnp.mean(x1 * x1, axis=-1, keepdims=True)
    zhat2 = (x1 - mu2) * lax.rsqrt(ms2 - mu2 * mu2 + LN_EPS)
    h1 = jnp.dot(zhat2, w_ref[2 * D:3 * D, 0:FF],
                 preferred_element_type=jnp.float32) + aux_ref[_ROW_B1:_ROW_B1 + 1, 0:FF]
    h1 = jnp.maximum(h1, 0.0)
    mlp_out = jnp.dot(h1, w_ref[3 * D:3 * D + FF, 0:D],
                      preferred_element_type=jnp.float32) + aux_ref[_ROW_B2:_ROW_B2 + 1, 0:D]

    # ----- residual 2 -----
    o_ref[...] = (x1 + mlp_out).astype(o_ref.dtype)


def prepare_params(raw_params):
    """One-time parameter transform (trace-time, not a per-call cost).

    Produces exactly two slabs:
      w_slab (3D+FF, 4D) = (160, 128):
        rows   0: 32, lanes 0:128  = [Wq/sqrt(DH) | Wk | Wv | 0]   (fused QKV+ones proj)
        rows  32: 64, lanes 0: 32  = Wo
        rows  64: 96, lanes 0: 64  = diag(ln2_gamma) @ W1          (ln2 affine folded in)
        rows  96:160, lanes 0: 32  = W2
      aux_slab (88, 128):
        row 0            = [bq/sqrt(DH) | bk | bv | 1]             (fused QKV+ones bias)
        rows 1..5        = ln1_gamma, ln1_beta, bo, (ln2_beta@W1 + b1), b2   (lane offset 0)
        rows 8..71       = head-selector mask tiled x3 over [k|v|ones] lanes   (C, 3D)
        rows 72..87      = additive cross-batch score mask {0, NEG}            (R, C)
    All slices used in the kernel start at lane 0 and sublane multiples of 8 (tile-aligned).
    """
    (ln1g, ln1b, wq, bq, wk, bk, wv, bv, wo, bo,
     ln2g, ln2b, w1, b1, w2, b2) = raw_params
    scale = 1.0 / math.sqrt(DH)

    wqkv_ext = jnp.concatenate(
        [wq * scale, wk, wv, jnp.zeros((D, D), jnp.float32)], axis=1)       # (D, 4D)
    bqkv_ext = jnp.concatenate(
        [bq * scale, bk, bv, jnp.ones((1, D), jnp.float32)], axis=1)        # (1, 4D)

    # fold ln2 affine into the first MLP linear
    w1_fold = ln2g.reshape(D, 1) * w1                                       # (D, FF)
    b1_fold = ln2b @ w1 + b1                                                # (1, FF)

    w_slab = jnp.zeros((3 * D + FF, 4 * D), jnp.float32)
    w_slab = w_slab.at[0:D, :].set(wqkv_ext)
    w_slab = w_slab.at[D:2 * D, 0:D].set(wo)
    w_slab = w_slab.at[2 * D:3 * D, 0:FF].set(w1_fold)
    w_slab = w_slab.at[3 * D:3 * D + FF, 0:D].set(w2)

    # data-independent masks, computed once here (never inside the kernel)
    col = np.arange(C)[:, None]
    lane = np.arange(D)[None, :]
    head_sel = (col // R == lane // DH).astype(np.float32)                  # (C, D)
    head_sel3 = np.tile(head_sel, (1, 3))                                   # (C, 3D)
    qi = np.arange(R)[:, None]
    ci = np.arange(C)[None, :]
    batch_mask = np.where(qi // S == (ci % R) // S, 0.0, NEG).astype(np.float32)  # (R, C)

    aux = jnp.zeros((AUX_ROWS, 4 * D), jnp.float32)
    aux = aux.at[_ROW_BQKV:_ROW_BQKV + 1, :].set(bqkv_ext)
    aux = aux.at[_ROW_LN1G:_ROW_LN1G + 1, 0:D].set(ln1g)
    aux = aux.at[_ROW_LN1B:_ROW_LN1B + 1, 0:D].set(ln1b)
    aux = aux.at[_ROW_BO:_ROW_BO + 1, 0:D].set(bo)
    aux = aux.at[_ROW_B1:_ROW_B1 + 1, 0:FF].set(b1_fold)
    aux = aux.at[_ROW_B2:_ROW_B2 + 1, 0:D].set(b2)
    aux = aux.at[_ROW_HSEL:_ROW_HSEL + C, 0:3 * D].set(jnp.asarray(head_sel3))
    aux = aux.at[_ROW_BMASK:_ROW_BMASK + R, 0:C].set(jnp.asarray(batch_mask))

    return (w_slab, aux)


def tf_block(x, packed_params):
    """TFBlock forward. Returns (out, attn_map); attn_map == -1 since get_attn=False."""
    w_slab, aux = packed_params
    # Single pallas_call, no grid: the whole problem (16x32 f32) is far below one grid
    # step's fixed overhead.  3 prologue DMAs total (x + 2 packed slabs).
    # If several independent TFBlock instances exist, add a leading "parallel" grid axis
    # so both v7x TensorCores are used.
    x2 = x.reshape(R, D)                    # wrapper-side flatten (free for row-major x)
    out = pl.pallas_call(
        tf_block_kernel,
        out_shape=jax.ShapeDtypeStruct((R, D), x.dtype),
    )(x2, w_slab, aux)
    return out.reshape(B, S, D), -1


# -------- pure-JAX reference (raw, unfused params) for the correctness check --------
def tf_block_ref(x, raw_params):
    (ln1g, ln1b, wq, bq, wk, bk, wv, bv, wo, bo,
     ln2g, ln2b, w1, b1, w2, b2) = raw_params

    def ln(z, g, bb):
        mu = jnp.mean(z, axis=-1, keepdims=True)
        var = jnp.mean((z - mu) ** 2, axis=-1, keepdims=True)
        return (z - mu) * lax.rsqrt(var + LN_EPS) * g + bb

    xn = ln(x, ln1g[0], ln1b[0])
    q = xn @ wq + bq[0]
    k = xn @ wk + bk[0]
    v = xn @ wv + bv[0]
    qh = q.reshape(B, S, H, DH)
    kh = k.reshape(B, S, H, DH)
    vh = v.reshape(B, S, H, DH)
    s = jnp.einsum('bqhd,bkhd->bhqk', qh, kh) / math.sqrt(DH)
    p = jax.nn.softmax(s, axis=-1)
    ctx = jnp.einsum('bhqk,bkhd->bqhd', p, vh).reshape(B, S, D)
    attn_out = ctx @ wo + bo[0]
    x1 = xn + attn_out                      # PyTorch: x = ln1(x); x = x + atten_out
    xn2 = ln(x1, ln2g[0], ln2b[0])
    mlp = jnp.maximum(xn2 @ w1 + b1[0], 0.0) @ w2 + b2[0]
    return x1 + mlp


def make_params(key):
    ks = jax.random.split(key, 10)

    def lin(k, fan_in, fan_out):
        bound = 1.0 / math.sqrt(fan_in)
        kw, kb = jax.random.split(k)
        w = jax.random.uniform(kw, (fan_in, fan_out), jnp.float32, -bound, bound)
        b = jax.random.uniform(kb, (1, fan_out), jnp.float32, -bound, bound)
        return w, b

    wq, bq = lin(ks[0], D, D)
    wk, bk = lin(ks[1], D, D)
    wv, bv = lin(ks[2], D, D)
    wo, bo = lin(ks[3], D, D)
    w1, b1 = lin(ks[4], D, FF)
    w2, b2 = lin(ks[5], FF, D)
    ln1g = 1.0 + 0.1 * jax.random.normal(ks[6], (1, D), jnp.float32)
    ln1b = 0.1 * jax.random.normal(ks[7], (1, D), jnp.float32)
    ln2g = 1.0 + 0.1 * jax.random.normal(ks[8], (1, D), jnp.float32)
    ln2b = 0.1 * jax.random.normal(ks[9], (1, D), jnp.float32)
    return (ln1g, ln1b, wq, bq, wk, bk, wv, bv, wo, bo,
            ln2g, ln2b, w1, b1, w2, b2)


if __name__ == "__main__":
    key = jax.random.PRNGKey(0)
    kx, kp = jax.random.split(key)
    x = jax.random.normal(kx, (B, S, D), jnp.float32)
    raw_params = make_params(kp)
    packed_params = prepare_params(raw_params)

    out, attn_map = tf_block(x, packed_params)
    out = jax.block_until_ready(out)

    ref = jax.block_until_ready(tf_block_ref(x, raw_params))
    max_err = float(jnp.max(jnp.abs(out - ref)))
    assert jnp.allclose(out, ref, atol=2e-4, rtol=2e-4), max_err
    assert attn_map == -1
    print("KERNEL_OK")
</pallas_src>

<mosaic_0001>
module attributes {stable_mosaic.version = 11 : i64} {
  func.func @tf_block_kernel(%arg0: memref<16x32xf32, #tpu.memory_space<vmem>>, %arg1: memref<160x128xf32, #tpu.memory_space<vmem>>, %arg2: memref<88x128xf32, #tpu.memory_space<vmem>>, %arg3: memref<16x32xf32, #tpu.memory_space<vmem>>) attributes {dimension_semantics = [], scalar_prefetch = 0 : i64, scratch_operands = 0 : i64, tpu.core_type = #tpu.core_type<tc>} {
    %c0 = arith.constant 0 : index
    %c0_0 = arith.constant 0 : index
    %0 = vector.load %arg0[%c0, %c0_0] : memref<16x32xf32, #tpu.memory_space<vmem>>, vector<16x32xf32>
    %cst = arith.constant dense<0.000000e+00> : vector<16xf32>
    %1 = vector.multi_reduction <add>, %0, %cst [1] : vector<16x32xf32> to vector<16xf32>
    %2 = vector.shape_cast %1 : vector<16xf32> to vector<16x1xf32>
    %cst_1 = arith.constant 3.200000e+01 : f32
    %3 = vector.broadcast %cst_1 : f32 to vector<16x1xf32>
    %4 = arith.divf %2, %3 : vector<16x1xf32>
    %5 = arith.mulf %0, %0 : vector<16x32xf32>
    %cst_2 = arith.constant dense<0.000000e+00> : vector<16xf32>
    %6 = vector.multi_reduction <add>, %5, %cst_2 [1] : vector<16x32xf32> to vector<16xf32>
    %7 = vector.shape_cast %6 : vector<16xf32> to vector<16x1xf32>
    %cst_3 = arith.constant 3.200000e+01 : f32
    %8 = vector.broadcast %cst_3 : f32 to vector<16x1xf32>
    %9 = arith.divf %7, %8 : vector<16x1xf32>
    %10 = vector.broadcast %4 : vector<16x1xf32> to vector<16x32xf32>
    %11 = arith.subf %0, %10 : vector<16x32xf32>
    %12 = arith.mulf %4, %4 : vector<16x1xf32>
    %13 = arith.subf %9, %12 : vector<16x1xf32>
    %cst_4 = arith.constant 9.99999974E-6 : f32
    %14 = vector.broadcast %cst_4 : f32 to vector<16x1xf32>
    %15 = arith.addf %13, %14 : vector<16x1xf32>
    %16 = math.rsqrt %15 : vector<16x1xf32>
    %17 = vector.broadcast %16 : vector<16x1xf32> to vector<16x32xf32>
    %18 = arith.mulf %11, %17 : vector<16x32xf32>
    %c1 = arith.constant 1 : index
    %c0_5 = arith.constant 0 : index
    %19 = vector.load %arg2[%c1, %c0_5] : memref<88x128xf32, #tpu.memory_space<vmem>>, vector<1x32xf32>
    %20 = vector.broadcast %19 : vector<1x32xf32> to vector<16x32xf32>
    %21 = arith.mulf %18, %20 : vector<16x32xf32>
    %c2 = arith.constant 2 : index
    %c0_6 = arith.constant 0 : index
    %22 = vector.load %arg2[%c2, %c0_6] : memref<88x128xf32, #tpu.memory_space<vmem>>, vector<1x32xf32>
    %23 = vector.broadcast %22 : vector<1x32xf32> to vector<16x32xf32>
    %24 = arith.addf %21, %23 : vector<16x32xf32>
    %c0_7 = arith.constant 0 : index
    %c0_8 = arith.constant 0 : index
    %25 = vector.load %arg1[%c0_7, %c0_8] : memref<160x128xf32, #tpu.memory_space<vmem>>, vector<32x128xf32>
    %cst_9 = arith.constant dense<0.000000e+00> : vector<16x128xf32>
    %26 = tpu.matmul %24, %25, %cst_9 {dimension_numbers = #tpu.dot_dimension_numbers<[1], [0], [0], [1], [0, 0, 1, 1], [], []>} : vector<16x32xf32>, vector<32x128xf32>, vector<16x128xf32> -> vector<16x128xf32>
    %c0_10 = arith.constant 0 : index
    %c0_11 = arith.constant 0 : index
    %27 = vector.load %arg2[%c0_10, %c0_11] : memref<88x128xf32, #tpu.memory_space<vmem>>, vector<1x128xf32>
    %28 = vector.broadcast %27 : vector<1x128xf32> to vector<16x128xf32>
    %29 = arith.addf %26, %28 : vector<16x128xf32>
    %30 = vector.extract_strided_slice %29 {offsets = [0, 0], sizes = [16, 32], strides = [1, 1]} : vector<16x128xf32> to vector<16x32xf32>
    %31 = vector.extract_strided_slice %29 {offsets = [0, 32], sizes = [16, 96], strides = [1, 1]} : vector<16x128xf32> to vector<16x96xf32>
    %32 = tpu.concatenate %31, %31, %31, %31 in 0 : vector<16x96xf32>, vector<16x96xf32>, vector<16x96xf32>, vector<16x96xf32> -> vector<64x96xf32>
    %c8 = arith.constant 8 : index
    %c0_12 = arith.constant 0 : index
    %33 = vector.load %arg2[%c8, %c0_12] : memref<88x128xf32, #tpu.memory_space<vmem>>, vector<64x96xf32>
    %34 = arith.mulf %32, %33 : vector<64x96xf32>
    %35 = vector.extract_strided_slice %34 {offsets = [0, 0], sizes = [64, 32], strides = [1, 1]} : vector<64x96xf32> to vector<64x32xf32>
    %36 = vector.extract_strided_slice %34 {offsets = [0, 32], sizes = [64, 64], strides = [1, 1]} : vector<64x96xf32> to vector<64x64xf32>
    %cst_13 = arith.constant dense<0.000000e+00> : vector<16x64xf32>
    %37 = tpu.matmul %30, %35, %cst_13 {dimension_numbers = #tpu.dot_dimension_numbers<[1], [1], [0], [0], [0, 0, 1, 0], [], []>} : vector<16x32xf32>, vector<64x32xf32>, vector<16x64xf32> -> vector<16x64xf32>
    %c72 = arith.constant 72 : index
    %c0_14 = arith.constant 0 : index
    %38 = vector.load %arg2[%c72, %c0_14] : memref<88x128xf32, #tpu.memory_space<vmem>>, vector<16x64xf32>
    %39 = arith.addf %37, %38 : vector<16x64xf32>
    %cst_15 = arith.constant dense<0xFF800000> : vector<16xf32>
    %40 = vector.multi_reduction <maximumf>, %39, %cst_15 [1] : vector<16x64xf32> to vector<16xf32>
    %41 = vector.shape_cast %40 : vector<16xf32> to vector<16x1xf32>
    %42 = vector.broadcast %41 : vector<16x1xf32> to vector<16x64xf32>
    %43 = arith.subf %39, %42 : vector<16x64xf32>
    %44 = math.exp %43 : vector<16x64xf32>
    %cst_16 = arith.constant dense<0.000000e+00> : vector<16x64xf32>
    %45 = tpu.matmul %44, %36, %cst_16 {dimension_numbers = #tpu.dot_dimension_numbers<[1], [0], [0], [1], [0, 0, 1, 1], [], []>} : vector<16x64xf32>, vector<64x64xf32>, vector<16x64xf32> -> vector<16x64xf32>
    %46 = vector.extract_strided_slice %45 {offsets = [0, 0], sizes = [16, 32], strides = [1, 1]} : vector<16x64xf32> to vector<16x32xf32>
    %47 = vector.extract_strided_slice %45 {offsets = [0, 32], sizes = [16, 32], strides = [1, 1]} : vector<16x64xf32> to vector<16x32xf32>
    %48 = tpu.reciprocal %47 : vector<16x32xf32> -> vector<16x32xf32>
    %49 = arith.mulf %46, %48 : vector<16x32xf32>
    %c32 = arith.constant 32 : index
    %c0_17 = arith.constant 0 : index
    %50 = vector.load %arg1[%c32, %c0_17] : memref<160x128xf32, #tpu.memory_space<vmem>>, vector<32x32xf32>
    %cst_18 = arith.constant dense<0.000000e+00> : vector<16x32xf32>
    %51 = tpu.matmul %49, %50, %cst_18 {dimension_numbers = #tpu.dot_dimension_numbers<[1], [0], [0], [1], [0, 0, 1, 1], [], []>} : vector<16x32xf32>, vector<32x32xf32>, vector<16x32xf32> -> vector<16x32xf32>
    %c3 = arith.constant 3 : index
    %c0_19 = arith.constant 0 : index
    %52 = vector.load %arg2[%c3, %c0_19] : memref<88x128xf32, #tpu.memory_space<vmem>>, vector<1x32xf32>
    %53 = vector.broadcast %52 : vector<1x32xf32> to vector<16x32xf32>
    %54 = arith.addf %51, %53 : vector<16x32xf32>
    %55 = arith.addf %24, %54 : vector<16x32xf32>
    %cst_20 = arith.constant dense<0.000000e+00> : vector<16xf32>
    %56 = vector.multi_reduction <add>, %55, %cst_20 [1] : vector<16x32xf32> to vector<16xf32>
    %57 = vector.shape_cast %56 : vector<16xf32> to vector<16x1xf32>
    %cst_21 = arith.constant 3.200000e+01 : f32
    %58 = vector.broadcast %cst_21 : f32 to vector<16x1xf32>
    %59 = arith.divf %57, %58 : vector<16x1xf32>
    %60 = arith.mulf %55, %55 : vector<16x32xf32>
    %cst_22 = arith.constant dense<0.000000e+00> : vector<16xf32>
    %61 = vector.multi_reduction <add>, %60, %cst_22 [1] : vector<16x32xf32> to vector<16xf32>
    %62 = vector.shape_cast %61 : vector<16xf32> to vector<16x1xf32>
    %cst_23 = arith.constant 3.200000e+01 : f32
    %63 = vector.broadcast %cst_23 : f32 to vector<16x1xf32>
    %64 = arith.divf %62, %63 : vector<16x1xf32>
    %65 = vector.broadcast %59 : vector<16x1xf32> to vector<16x32xf32>
    %66 = arith.subf %55, %65 : vector<16x32xf32>
    %67 = arith.mulf %59, %59 : vector<16x1xf32>
    %68 = arith.subf %64, %67 : vector<16x1xf32>
    %cst_24 = arith.constant 9.99999974E-6 : f32
    %69 = vector.broadcast %cst_24 : f32 to vector<16x1xf32>
    %70 = arith.addf %68, %69 : vector<16x1xf32>
    %71 = math.rsqrt %70 : vector<16x1xf32>
    %72 = vector.broadcast %71 : vector<16x1xf32> to vector<16x32xf32>
    %73 = arith.mulf %66, %72 : vector<16x32xf32>
    %c64 = arith.constant 64 : index
    %c0_25 = arith.constant 0 : index
    %74 = vector.load %arg1[%c64, %c0_25] : memref<160x128xf32, #tpu.memory_space<vmem>>, vector<32x64xf32>
    %cst_26 = arith.constant dense<0.000000e+00> : vector<16x64xf32>
    %75 = tpu.matmul %73, %74, %cst_26 {dimension_numbers = #tpu.dot_dimension_numbers<[1], [0], [0], [1], [0, 0, 1, 1], [], []>} : vector<16x32xf32>, vector<32x64xf32>, vector<16x64xf32> -> vector<16x64xf32>
    %c4 = arith.constant 4 : index
    %c0_27 = arith.constant 0 : index
    %76 = vector.load %arg2[%c4, %c0_27] : memref<88x128xf32, #tpu.memory_space<vmem>>, vector<1x64xf32>
    %77 = vector.broadcast %76 : vector<1x64xf32> to vector<16x64xf32>
    %78 = arith.addf %75, %77 : vector<16x64xf32>
    %cst_28 = arith.constant 0.000000e+00 : f32
    %79 = vector.broadcast %cst_28 : f32 to vector<16x64xf32>
    %80 = arith.maximumf %78, %79 : vector<16x64xf32>
    %c96 = arith.constant 96 : index
    %c0_29 = arith.constant 0 : index
    %81 = vector.load %arg1[%c96, %c0_29] : memref<160x128xf32, #tpu.memory_space<vmem>>, vector<64x32xf32>
    %cst_30 = arith.constant dense<0.000000e+00> : vector<16x32xf32>
    %82 = tpu.matmul %80, %81, %cst_30 {dimension_numbers = #tpu.dot_dimension_numbers<[1], [0], [0], [1], [0, 0, 1, 1], [], []>} : vector<16x64xf32>, vector<64x32xf32>, vector<16x32xf32> -> vector<16x32xf32>
    %c5 = arith.constant 5 : index
    %c0_31 = arith.constant 0 : index
    %83 = vector.load %arg2[%c5, %c0_31] : memref<88x128xf32, #tpu.memory_space<vmem>>, vector<1x32xf32>
    %84 = vector.broadcast %83 : vector<1x32xf32> to vector<16x32xf32>
    %85 = arith.addf %82, %84 : vector<16x32xf32>
    %86 = arith.addf %55, %85 : vector<16x32xf32>
    %c0_32 = arith.constant 0 : index
    %c0_33 = arith.constant 0 : index
    %87 = vector.load %arg3[%c0_32, %c0_33] : memref<16x32xf32, #tpu.memory_space<vmem>>, vector<16x32xf32>
    tpu.vector_store %arg3[%c0_32, %c0_33], %86 {strides = array<i32>} : memref<16x32xf32, #tpu.memory_space<vmem>>, vector<16x32xf32>,
    return
  }
}

</mosaic_0001>

<llo_original>
// kernel: tpu_custom_call.1
$region0: #{tpu_custom_call.1}
  #allocation0 [shape = 'u32[]', space=smem, size = 0x4, offset = 0x4, fixed_abs, tag = 'smem constant byte address 0x4 - core index']
  #allocation1 [shape = 'u32[72,128]{1,0:T(1,128)}', space=vmem, size = 0x9000, scoped, tag = 'internal scratch']
  %s0 = inlined_call_operand.hbm [shape: f32[16,32], index: 0, kind: input, shape index: {}]
  %s1 = inlined_call_operand.hbm [shape: f32[160,128], index: 1, kind: input, shape index: {}]
  %s2 = inlined_call_operand.hbm [shape: f32[88,128], index: 2, kind: input, shape index: {}]
  %s3 = inlined_call_operand.hbm [shape: f32[16,32], index: 3, kind: output, shape index: {}]
  %s4 = sld [smem:[#allocation0]]
  $region34: #{tpu_custom_call.1} parent=0
    _
  %s6 = ssub.s32 1, %s4
  %s7 = scalar_select 0, %s6, %s4
  $region1: #{tpu_custom_call.1} parent=0
    #allocation2 [shape = 'u8[8192]{0}', space=vmem, size = 0x2000, scoped, tag = 'input window, operand 0, single buffered']
    #allocation3 [shape = 's32[1]{0}', space=sflag, size = 0x4, scoped, tag = 'scoped memory for tpu_custom_call.1']
    #allocation4 [shape = 's32[1]{0}', space=sflag, size = 0x4, scoped, tag = 'scoped memory for tpu_custom_call.1']
    #allocation5 [shape = 'u8[81920]{0}', space=vmem, size = 0x14000, scoped, tag = 'input window, operand 1, single buffered']
    #allocation6 [shape = 's32[1]{0}', space=sflag, size = 0x4, scoped, tag = 'scoped memory for tpu_custom_call.1']
    #allocation7 [shape = 'u8[45056]{0}', space=vmem, size = 0xb000, scoped, tag = 'input window, operand 2, single buffered']
    #allocation8 [shape = 'u8[8192]{0}', space=vmem, size = 0x2000, scoped, tag = 'output window, operand 0, single buffered']
    %8 = vsyncpa [#allocation3], 0
    %9 = vsyncpa [#allocation6], 0
    %10 = vsyncpa [#allocation4], 0
    // Predicated region
    $region2: #{tpu_custom_call.1} parent=1 // pred_check
      _
    $region3: #{tpu_custom_call.1} parent=1 // pred_check_branch
      %12 = sbr.rel (0) target = $region5
    $region4: #{tpu_custom_call.1} parent=1 // pred_region
      %14 = vsyncadd [#allocation3], 0
      %s15 = sshll.u32 %s0, 4
      %s16 = int_to_ptr.hbm [resolvable:$true] %s15
      %s17 = sshll.u32 [#allocation2], 4
      %s18 = int_to_ptr.vmem [resolvable:$true] %s17
      %23 = dma.hbm_to_vmem [thread:$0]  %s16, 256, %s18, [#allocation3], 128, 128, 8
    $region5: #{tpu_custom_call.1} parent=1 // pred_fallthru
      _
    // Predicated region
    $region6: #{tpu_custom_call.1} parent=1 // pred_check
      _
    $region7: #{tpu_custom_call.1} parent=1 // pred_check_branch
      %25 = sbr.rel (0) target = $region9
    $region8: #{tpu_custom_call.1} parent=1 // pred_region
      %27 = vsyncadd [#allocation6], 0
      %s28 = sshll.u32 %s1, 4
      %s29 = int_to_ptr.hbm [resolvable:$true] %s28
      %s30 = sshll.u32 [#allocation5], 4
      %s31 = int_to_ptr.vmem [resolvable:$true] %s30
      %36 = dma.hbm_to_vmem [thread:$0]  %s29, 2560, %s31, [#allocation6], 128, 128, 8
    $region9: #{tpu_custom_call.1} parent=1 // pred_fallthru
      _
    // Predicated region
    $region10: #{tpu_custom_call.1} parent=1 // pred_check
      _
    $region11: #{tpu_custom_call.1} parent=1 // pred_check_branch
      %38 = sbr.rel (0) target = $region13
    $region12: #{tpu_custom_call.1} parent=1 // pred_region
      %40 = vsyncadd [#allocation6], 0
      %s41 = sshll.u32 %s2, 4
      %s42 = int_to_ptr.hbm [resolvable:$true] %s41
      %s43 = sshll.u32 [#allocation7], 4
      %s44 = int_to_ptr.vmem [resolvable:$true] %s43
      %49 = dma.hbm_to_vmem [thread:$0]  %s42, 1408, %s44, [#allocation6], 128, 128, 8
    $region13: #{tpu_custom_call.1} parent=1 // pred_fallthru
      _
    // Predicated region
    $region14: #{tpu_custom_call.1} parent=1 // pred_check
      _
    $region15: #{tpu_custom_call.1} parent=1 // pred_check_branch
      %51 = sbr.rel (0) target = $region17
    $region16: #{tpu_custom_call.1} parent=1 // pred_region
      %53 = dma.done [#allocation3], 256
    $region17: #{tpu_custom_call.1} parent=1 // pred_fallthru
      _
    // Predicated region
    $region18: #{tpu_custom_call.1} parent=1 // pred_check
      _
    $region19: #{tpu_custom_call.1} parent=1 // pred_check_branch
      %55 = sbr.rel (0) target = $region21
    $region20: #{tpu_custom_call.1} parent=1 // pred_region
      %57 = dma.done [#allocation6], 2560
    $region21: #{tpu_custom_call.1} parent=1 // pred_fallthru
      _
    // Predicated region
    $region22: #{tpu_custom_call.1} parent=1 // pred_check
      _
    $region23: #{tpu_custom_call.1} parent=1 // pred_check_branch
      %59 = sbr.rel (0) target = $region25
    $region24: #{tpu_custom_call.1} parent=1 // pred_region
      %61 = dma.done [#allocation6], 1408
    $region25: #{tpu_custom_call.1} parent=1 // pred_fallthru
      _
    %v62 = vld [vmem:[#allocation2] sm:$0xff]
    %v63 = vld [vmem:[#allocation2 + $0x8] sm:$0xff]
    %vm64 = vcmask 261120
    %v65 = vsel %vm64, %v62, 0.0
    %66 = vadd.xlane.f32.xlu0 %v65
    %v67 = vpop.xlane.xlu0 %66
    %v68 = vsel %vm64, %v63, 0.0
    %69 = vadd.xlane.f32.xlu0 %v68
    %v70 = vpop.xlane.xlu0 %69
    %v71 = vrcp.pop 32.0
    %v72 = vmul.f32 32.0, %v71
    %v73 = vsub.f32 1.0, %v72
    %v74 = vmul.f32 %v71, %v73
    %v75 = vadd.f32 %v71, %v74
    %vm76 = vweird.f32 %v71
    %v77 = vsel %vm76, %v71, %v75
    %v78 = vmul.f32 %v67, %v77
    %v79 = vmul.f32 %v70, %v77
    %v80 = vmul.f32 %v62, %v62
    %v81 = vmul.f32 %v63, %v63
    %v82 = vsel %vm64, %v80, 0.0
    %83 = vadd.xlane.f32.xlu0 %v82
    %v84 = vpop.xlane.xlu0 %83
    %v85 = vsel %vm64, %v81, 0.0
    %86 = vadd.xlane.f32.xlu0 %v85
    %v87 = vpop.xlane.xlu0 %86
    %v88 = vmul.f32 %v84, %v77
    %v89 = vmul.f32 %v87, %v77
    %v90 = vsub.f32 %v62, %v78
    %v91 = vsub.f32 %v63, %v79
    %v92 = vmul.f32 %v78, %v78
    %v93 = vmul.f32 %v79, %v79
    %v94 = vsub.f32 %v88, %v92
    %v95 = vsub.f32 %v89, %v93
    %v96 = vadd.f32 %v94, 1e-05
    %v97 = vadd.f32 %v95, 1e-05
    %v98 = vrsqrt.pop %v96
    %v99 = vmul.f32 %v98, %v96
    %v100 = vmul.f32 %v99, %v98
    %v101 = vmul.f32 0.5, %v100
    %v102 = vsub.f32 1.5, %v101
    %v103 = vmul.f32 %v98, %v102
    %vm104 = vweird.f32 %v96
    %vm105 = vweird.f32 %v98
    %vm106 = vmor %vm104, %vm105
    %v107 = vsel %vm106, %v98, %v103
    %v108 = vrsqrt.pop %v97
    %v109 = vmul.f32 %v108, %v97
    %v110 = vmul.f32 %v109, %v108
    %v111 = vmul.f32 0.5, %v110
    %v112 = vsub.f32 1.5, %v111
    %v113 = vmul.f32 %v108, %v112
    %vm114 = vweird.f32 %v97
    %vm115 = vweird.f32 %v108
    %vm116 = vmor %vm114, %vm115
    %v117 = vsel %vm116, %v108, %v113
    %v118 = vmul.f32 %v90, %v107
    %v119 = vmul.f32 %v91, %v117
    %v120 = vld [vmem:[#allocation7 + $0x1] sm:$0x1]
    %v121 = vperm.slane %v120, 0
    %v122 = vmul.f32 %v118, %v121
    %v123 = vmul.f32 %v119, %v121
    %v124 = vld [vmem:[#allocation7 + $0x2] sm:$0x1]
    %v125 = vperm.slane %v124, 0
    %v126 = vadd.f32 %v122, %v125
    %v127 = vadd.f32 %v123, %v125
    %v128 = vld [vmem:[#allocation5] sm:$0xff]
    %v129 = vld [vmem:[#allocation5 + $0x8] sm:$0xff]
    %v130 = vld [vmem:[#allocation5 + $0x10] sm:$0xff]
    %v131 = vld [vmem:[#allocation5 + $0x18] sm:$0xff]
    %v132 = vld [vmem:[#allocation7] sm:$0x1]
    %v133 = vperm.slane %v132, 0
    %v135 = vsel %vm64, %v126, 0
    %v138 = vsel %vm64, %v127, 0
    %140 = vmatpush.msra.mxu0 0.0
    %141 = vmatpush.msra.mxu0 0.0
    %142 = vmatpush.msra.mxu0 0.0
    %143 = vmatpush.msra.mxu0 0.0
    %144 = vmatpush.msra.mxu0 0.0
    %145 = vmatpush.msra.mxu0 0.0
    %146 = vmatpush.msra.mxu0 0.0
    %147 = vmatpush.msra.mxu0 0.0
    %148 = vmatpush.msra.mxu0 0.0
    %149 = vmatpush.msra.mxu0 0.0
    %150 = vmatpush.msra.mxu0 0.0
    %151 = vmatpush.msra.mxu0 0.0
    %152 = vmatpush.msra.mxu0 %v131
    %153 = vmatpush.msra.mxu0 %v130
    %154 = vmatpush.msra.mxu0 %v129
    %155 = vmatpush.msra.mxu0 %v128
    %156 = vmatmul.f32.gmra.mxu0 %v135
    %v157 = vpop.f32.mrf.mxu0
    %v158 = vadd.f32 %v133, %v157
    %159 = vmatmul.f32.gmra.mxu0 %v138
    %v160 = vpop.f32.mrf.mxu0
    %v161 = vadd.f32 %v133, %v160
    %162 = vdwg.mxu0
    %v163 = vld [vmem:[#allocation7 + $0x8] sm:$0xff]
    %v164 = vld [vmem:[#allocation7 + $0x10] sm:$0xff]
    %v165 = vld [vmem:[#allocation7 + $0x18] sm:$0xff]
    %v166 = vld [vmem:[#allocation7 + $0x20] sm:$0xff]
    %v167 = vld [vmem:[#allocation7 + $0x28] sm:$0xff]
    %v168 = vld [vmem:[#allocation7 + $0x30] sm:$0xff]
    %v169 = vld [vmem:[#allocation7 + $0x38] sm:$0xff]
    %v170 = vld [vmem:[#allocation7 + $0x40] sm:$0xff]
    %179 = vrot.lane.b32.xlu0 %v163, 32
    %v180 = vpop.permute.xlu0 %179
    %181 = vrot.lane.b32.xlu0 %v164, 32
    %v182 = vpop.permute.xlu0 %181
    %183 = vrot.lane.b32.xlu0 %v165, 32
    %v184 = vpop.permute.xlu0 %183
    %185 = vrot.lane.b32.xlu0 %v166, 32
    %v186 = vpop.permute.xlu0 %185
    %187 = vrot.lane.b32.xlu0 %v167, 32
    %v188 = vpop.permute.xlu0 %187
    %189 = vrot.lane.b32.xlu0 %v168, 32
    %v190 = vpop.permute.xlu0 %189
    %191 = vrot.lane.b32.xlu0 %v169, 32
    %v192 = vpop.permute.xlu0 %191
    %193 = vrot.lane.b32.xlu0 %v170, 32
    %v194 = vpop.permute.xlu0 %193
    %v203 = vmul.f32 %v158, %v180
    %v204 = vmul.f32 %v161, %v182
    %v205 = vmul.f32 %v158, %v184
    %v206 = vmul.f32 %v161, %v186
    %v207 = vmul.f32 %v158, %v188
    %v208 = vmul.f32 %v161, %v190
    %v209 = vmul.f32 %v158, %v192
    %v210 = vmul.f32 %v161, %v194
    %v211 = vld [vmem:[#allocation7 + $0x48] sm:$0xff]
    %v212 = vld [vmem:[#allocation7 + $0x50] sm:$0xff]
    %221 = vrot.lane.b32.xlu0 %v203, 96
    %v222 = vpop.permute.xlu0 %221
    %223 = vrot.lane.b32.xlu0 %v204, 96
    %v224 = vpop.permute.xlu0 %223
    %225 = vrot.lane.b32.xlu0 %v205, 96
    %v226 = vpop.permute.xlu0 %225
    %227 = vrot.lane.b32.xlu0 %v206, 96
    %v228 = vpop.permute.xlu0 %227
    %229 = vrot.lane.b32.xlu0 %v207, 96
    %v230 = vpop.permute.xlu0 %229
    %231 = vrot.lane.b32.xlu0 %v208, 96
    %v232 = vpop.permute.xlu0 %231
    %233 = vrot.lane.b32.xlu0 %v209, 96
    %v234 = vpop.permute.xlu0 %233
    %235 = vrot.lane.b32.xlu0 %v210, 96
    %v236 = vpop.permute.xlu0 %235
    %v238 = vsel %vm64, %v158, 0
    %v241 = vsel %vm64, %v161, 0
    %v243 = vsel %vm64, %v222, 0
    %v245 = vsel %vm64, %v224, 0
    %v247 = vsel %vm64, %v226, 0
    %v249 = vsel %vm64, %v228, 0
    %v251 = vsel %vm64, %v230, 0
    %v253 = vsel %vm64, %v232, 0
    %v255 = vsel %vm64, %v234, 0
    %v257 = vsel %vm64, %v236, 0
    %259 = vmatpush.xpose.msra.mxu0 0.0
    %260 = vmatpush.xpose.msra.mxu0 0.0
    %261 = vmatpush.xpose.msra.mxu0 0.0
    %262 = vmatpush.xpose.msra.mxu0 0.0
    %263 = vmatpush.xpose.msra.mxu0 0.0
    %264 = vmatpush.xpose.msra.mxu0 0.0
    %265 = vmatpush.xpose.msra.mxu0 0.0
    %266 = vmatpush.xpose.msra.mxu0 0.0
    %267 = vmatpush.xpose.msra.mxu0 %v257
    %268 = vmatpush.xpose.msra.mxu0 %v255
    %269 = vmatpush.xpose.msra.mxu0 %v253
    %270 = vmatpush.xpose.msra.mxu0 %v251
    %271 = vmatpush.xpose.msra.mxu0 %v249
    %272 = vmatpush.xpose.msra.mxu0 %v247
    %273 = vmatpush.xpose.msra.mxu0 %v245
    %274 = vmatpush.xpose.msra.mxu0 %v243
    %275 = vmatmul.f32.gmra.mxu0 %v238
    %v276 = vpop.f32.mrf.mxu0
    %v277 = vadd.f32 %v211, %v276
    %278 = vmatmul.f32.gmra.mxu0 %v241
    %v279 = vpop.f32.mrf.mxu0
    %v280 = vadd.f32 %v212, %v279
    %281 = vdwg.mxu0
    %vm282 = vcmask 523264
    %v283 = vsel %vm282, %v277, -inf
    %284 = vmax.xlane.f32.xlu0 %v283
    %v285 = vpop.xlane.xlu0 %284
    %v286 = vsel %vm282, %v280, -inf
    %287 = vmax.xlane.f32.xlu0 %v286
    %v288 = vpop.xlane.xlu0 %287
    %v289 = vsub.f32 %v277, %v285
    %v290 = vsub.f32 %v280, %v288
    %v291 = vmul.f32 %v289, 1.442695
    %v292 = vpow.pop %v291
    %v293 = vmul.f32 %v290, 1.442695
    %v294 = vpow.pop %v293
    %295 = vrot.lane.b32.xlu0 %v203, 64
    %v296 = vpop.permute.xlu0 %295
    %297 = vrot.lane.b32.xlu0 %v204, 64
    %v298 = vpop.permute.xlu0 %297
    %299 = vrot.lane.b32.xlu0 %v205, 64
    %v300 = vpop.permute.xlu0 %299
    %301 = vrot.lane.b32.xlu0 %v206, 64
    %v302 = vpop.permute.xlu0 %301
    %303 = vrot.lane.b32.xlu0 %v207, 64
    %v304 = vpop.permute.xlu0 %303
    %305 = vrot.lane.b32.xlu0 %v208, 64
    %v306 = vpop.permute.xlu0 %305
    %307 = vrot.lane.b32.xlu0 %v209, 64
    %v308 = vpop.permute.xlu0 %307
    %309 = vrot.lane.b32.xlu0 %v210, 64
    %v310 = vpop.permute.xlu0 %309
    %v320 = vsel %vm282, %v292, 0
    %v323 = vsel %vm282, %v294, 0
    %325 = vmatpush.msra.mxu0 0.0
    %326 = vmatpush.msra.mxu0 0.0
    %327 = vmatpush.msra.mxu0 0.0
    %328 = vmatpush.msra.mxu0 0.0
    %329 = vmatpush.msra.mxu0 0.0
    %330 = vmatpush.msra.mxu0 0.0
    %331 = vmatpush.msra.mxu0 0.0
    %332 = vmatpush.msra.mxu0 0.0
    %333 = vmatpush.msra.mxu0 %v310
    %334 = vmatpush.msra.mxu0 %v308
    %335 = vmatpush.msra.mxu0 %v306
    %336 = vmatpush.msra.mxu0 %v304
    %337 = vmatpush.msra.mxu0 %v302
    %338 = vmatpush.msra.mxu0 %v300
    %339 = vmatpush.msra.mxu0 %v298
    %340 = vmatpush.msra.mxu0 %v296
    %341 = vmatmul.f32.gmra.mxu0 %v320
    %v342 = vpop.f32.mrf.mxu0
    %v343 = vadd.f32 0.0, %v342
    %344 = vmatmul.f32.gmra.mxu0 %v323
    %v345 = vpop.f32.mrf.mxu0
    %v346 = vadd.f32 0.0, %v345
    %347 = vdwg.mxu0
    %v348 = vrcp.pop %v343
    %v349 = vmul.f32 %v343, %v348
    %v350 = vsub.f32 1.0, %v349
    %v351 = vmul.f32 %v348, %v350
    %v352 = vadd.f32 %v348, %v351
    %vm353 = vweird.f32 %v343
    %vm354 = vweird.f32 %v348
    %vm355 = vmor %vm353, %vm354
    %v356 = vsel %vm355, %v348, %v352
    %v357 = vand.u32 2147483647, %v343
    %vm358 = vcmp.eq.f32.partialorder %v357, 8.507059e+37
    %v359 = vand.u32 %v343, 2147483648
    %v360 = vor.u32 1.1754944e-38, %v359
    %v361 = vsel %vm358, %v360, %v356
    %v362 = vrcp.pop %v346
    %v363 = vmul.f32 %v346, %v362
    %v364 = vsub.f32 1.0, %v363
    %v365 = vmul.f32 %v362, %v364
    %v366 = vadd.f32 %v362, %v365
    %vm367 = vweird.f32 %v346
    %vm368 = vweird.f32 %v362
    %vm369 = vmor %vm367, %vm368
    %v370 = vsel %vm369, %v362, %v366
    %v371 = vand.u32 2147483647, %v346
    %vm372 = vcmp.eq.f32.partialorder %v371, 8.507059e+37
    %v373 = vand.u32 %v346, 2147483648
    %v374 = vor.u32 1.1754944e-38, %v373
    %v375 = vsel %vm372, %v374, %v370
    %378 = vrot.lane.b32.xlu0 %v361, 96
    %v379 = vpop.permute.xlu0 %378
    %380 = vrot.lane.b32.xlu0 %v375, 96
    %v381 = vpop.permute.xlu0 %380
    %v384 = vmul.f32 %v343, %v379
    %v385 = vmul.f32 %v346, %v381
    %v386 = vld [vmem:[#allocation5 + $0x20] sm:$0xff]
    %v387 = vld [vmem:[#allocation5 + $0x28] sm:$0xff]
    %v388 = vld [vmem:[#allocation5 + $0x30] sm:$0xff]
    %v389 = vld [vmem:[#allocation5 + $0x38] sm:$0xff]
    %v390 = vld [vmem:[#allocation7 + $0x3] sm:$0x1]
    %v391 = vperm.slane %v390, 0
    %v393 = vsel %vm64, %v384, 0
    %v396 = vsel %vm64, %v385, 0
    %398 = vmatpush.msra.mxu0 0.0
    %399 = vmatpush.msra.mxu0 0.0
    %400 = vmatpush.msra.mxu0 0.0
    %401 = vmatpush.msra.mxu0 0.0
    %402 = vmatpush.msra.mxu0 0.0
    %403 = vmatpush.msra.mxu0 0.0
    %404 = vmatpush.msra.mxu0 0.0
    %405 = vmatpush.msra.mxu0 0.0
    %406 = vmatpush.msra.mxu0 0.0
    %407 = vmatpush.msra.mxu0 0.0
    %408 = vmatpush.msra.mxu0 0.0
    %409 = vmatpush.msra.mxu0 0.0
    %410 = vmatpush.msra.mxu0 %v389
    %411 = vmatpush.msra.mxu0 %v388
    %412 = vmatpush.msra.mxu0 %v387
    %413 = vmatpush.msra.mxu0 %v386
    %414 = vmatmul.f32.gmra.mxu0 %v393
    %v415 = vpop.f32.mrf.mxu0
    %v416 = vadd.f32 %v391, %v415
    %417 = vmatmul.f32.gmra.mxu0 %v396
    %v418 = vpop.f32.mrf.mxu0
    %v419 = vadd.f32 %v391, %v418
    %420 = vdwg.mxu0
    %v421 = vadd.f32 %v126, %v416
    %v422 = vadd.f32 %v127, %v419
    %v423 = vsel %vm64, %v421, 0.0
    %424 = vadd.xlane.f32.xlu0 %v423
    %v425 = vpop.xlane.xlu0 %424
    %v426 = vsel %vm64, %v422, 0.0
    %427 = vadd.xlane.f32.xlu0 %v426
    %v428 = vpop.xlane.xlu0 %427
    %v429 = vmul.f32 %v425, %v77
    %v430 = vmul.f32 %v428, %v77
    %v431 = vmul.f32 %v421, %v421
    %v432 = vmul.f32 %v422, %v422
    %v433 = vsel %vm64, %v431, 0.0
    %434 = vadd.xlane.f32.xlu0 %v433
    %v435 = vpop.xlane.xlu0 %434
    %v436 = vsel %vm64, %v432, 0.0
    %437 = vadd.xlane.f32.xlu0 %v436
    %v438 = vpop.xlane.xlu0 %437
    %v439 = vmul.f32 %v435, %v77
    %v440 = vmul.f32 %v438, %v77
    %v441 = vsub.f32 %v421, %v429
    %v442 = vsub.f32 %v422, %v430
    %v443 = vmul.f32 %v429, %v429
    %v444 = vmul.f32 %v430, %v430
    %v445 = vsub.f32 %v439, %v443
    %v446 = vsub.f32 %v440, %v444
    %v447 = vadd.f32 %v445, 1e-05
    %v448 = vadd.f32 %v446, 1e-05
    %v449 = vrsqrt.pop %v447
    %v450 = vmul.f32 %v449, %v447
    %v451 = vmul.f32 %v450, %v449
    %v452 = vmul.f32 0.5, %v451
    %v453 = vsub.f32 1.5, %v452
    %v454 = vmul.f32 %v449, %v453
    %vm455 = vweird.f32 %v447
    %vm456 = vweird.f32 %v449
    %vm457 = vmor %vm455, %vm456
    %v458 = vsel %vm457, %v449, %v454
    %v459 = vrsqrt.pop %v448
    %v460 = vmul.f32 %v459, %v448
    %v461 = vmul.f32 %v460, %v459
    %v462 = vmul.f32 0.5, %v461
    %v463 = vsub.f32 1.5, %v462
    %v464 = vmul.f32 %v459, %v463
    %vm465 = vweird.f32 %v448
    %vm466 = vweird.f32 %v459
    %vm467 = vmor %vm465, %vm466
    %v468 = vsel %vm467, %v459, %v464
    %v469 = vmul.f32 %v441, %v458
    %v470 = vmul.f32 %v442, %v468
    %v471 = vld [vmem:[#allocation5 + $0x40] sm:$0xff]
    %v472 = vld [vmem:[#allocation5 + $0x48] sm:$0xff]
    %v473 = vld [vmem:[#allocation5 + $0x50] sm:$0xff]
    %v474 = vld [vmem:[#allocation5 + $0x58] sm:$0xff]
    %v475 = vld [vmem:[#allocation7 + $0x4] sm:$0x1]
    %v476 = vperm.slane %v475, 0
    %v478 = vsel %vm64, %v469, 0
    %v481 = vsel %vm64, %v470, 0
    %483 = vmatpush.msra.mxu0 0.0
    %484 = vmatpush.msra.mxu0 0.0
    %485 = vmatpush.msra.mxu0 0.0
    %486 = vmatpush.msra.mxu0 0.0
    %487 = vmatpush.msra.mxu0 0.0
    %488 = vmatpush.msra.mxu0 0.0
    %489 = vmatpush.msra.mxu0 0.0
    %490 = vmatpush.msra.mxu0 0.0
    %491 = vmatpush.msra.mxu0 0.0
    %492 = vmatpush.msra.mxu0 0.0
    %493 = vmatpush.msra.mxu0 0.0
    %494 = vmatpush.msra.mxu0 0.0
    %495 = vmatpush.msra.mxu0 %v474
    %496 = vmatpush.msra.mxu0 %v473
    %497 = vmatpush.msra.mxu0 %v472
    %498 = vmatpush.msra.mxu0 %v471
    %499 = vmatmul.f32.gmra.mxu0 %v478
    %v500 = vpop.f32.mrf.mxu0
    %v501 = vadd.f32 %v476, %v500
    %502 = vmatmul.f32.gmra.mxu0 %v481
    %v503 = vpop.f32.mrf.mxu0
    %v504 = vadd.f32 %v476, %v503
    %505 = vdwg.mxu0
    %v506 = vmax.f32 %v501, 0.0
    %v507 = vmax.f32 %v504, 0.0
    %v508 = vld [vmem:[#allocation5 + $0x60] sm:$0xff]
    %v509 = vld [vmem:[#allocation5 + $0x68] sm:$0xff]
    %v510 = vld [vmem:[#allocation5 + $0x70] sm:$0xff]
    %v511 = vld [vmem:[#allocation5 + $0x78] sm:$0xff]
    %v512 = vld [vmem:[#allocation5 + $0x80] sm:$0xff]
    %v513 = vld [vmem:[#allocation5 + $0x88] sm:$0xff]
    %v514 = vld [vmem:[#allocation5 + $0x90] sm:$0xff]
    %v515 = vld [vmem:[#allocation5 + $0x98] sm:$0xff]
    %v516 = vld [vmem:[#allocation7 + $0x5] sm:$0x1]
    %v517 = vperm.slane %v516, 0
    %v519 = vsel %vm282, %v506, 0
    %v522 = vsel %vm282, %v507, 0
    %524 = vmatpush.msra.mxu0 0.0
    %525 = vmatpush.msra.mxu0 0.0
    %526 = vmatpush.msra.mxu0 0.0
    %527 = vmatpush.msra.mxu0 0.0
    %528 = vmatpush.msra.mxu0 0.0
    %529 = vmatpush.msra.mxu0 0.0
    %530 = vmatpush.msra.mxu0 0.0
    %531 = vmatpush.msra.mxu0 0.0
    %532 = vmatpush.msra.mxu0 %v515
    %533 = vmatpush.msra.mxu0 %v514
    %534 = vmatpush.msra.mxu0 %v513
    %535 = vmatpush.msra.mxu0 %v512
    %536 = vmatpush.msra.mxu0 %v511
    %537 = vmatpush.msra.mxu0 %v510
    %538 = vmatpush.msra.mxu0 %v509
    %539 = vmatpush.msra.mxu0 %v508
    %540 = vmatmul.f32.gmra.mxu0 %v519
    %v541 = vpop.f32.mrf.mxu0
    %v542 = vadd.f32 %v517, %v541
    %543 = vmatmul.f32.gmra.mxu0 %v522
    %v544 = vpop.f32.mrf.mxu0
    %v545 = vadd.f32 %v517, %v544
    %546 = vdwg.mxu0
    %v547 = vadd.f32 %v421, %v542
    %v548 = vadd.f32 %v422, %v545
    %549 = vst.msk [vmem:[#allocation8] sm:$0xff] %vm64, %v547
    %550 = vst.msk [vmem:[#allocation8 + $0x8] sm:$0xff] %vm64, %v548
    // Predicated region
    $region26: #{tpu_custom_call.1} parent=1 // pred_check
      _
    $region27: #{tpu_custom_call.1} parent=1 // pred_check_branch
      %552 = sbr.rel (0) target = $region29
    $region28: #{tpu_custom_call.1} parent=1 // pred_region
      %554 = vsyncadd [#allocation4], 0
      %s555 = sshll.u32 [#allocation8], 4
      %s556 = int_to_ptr.vmem [resolvable:$true] %s555
      %s557 = sshll.u32 %s3, 4
      %s558 = int_to_ptr.hbm [resolvable:$true] %s557
      %563 = dma.vmem_to_hbm [thread:$0]  %s556, 256, %s558, [#allocation4], 128, 128, 8
    $region29: #{tpu_custom_call.1} parent=1 // pred_fallthru
      _
    // Predicated region
    $region30: #{tpu_custom_call.1} parent=1 // pred_check
      _
    $region31: #{tpu_custom_call.1} parent=1 // pred_check_branch
      %565 = sbr.rel (0) target = $region33
    $region32: #{tpu_custom_call.1} parent=1 // pred_region
      %567 = dma.done [#allocation4], 256
    $region33: #{tpu_custom_call.1} parent=1 // pred_fallthru
      _
    %568 = vsyncpa [#allocation3], 1
    %569 = vsyncpa [#allocation6], 1
    %570 = vsyncpa [#allocation4], 1

</llo_original>
